<compile_context>
chip_gen: v6e
topology: v6e:2x2x1
jax: 0.10.0
libtpu: 0.0.40
codegen_flags: <defaults>
</compile_context>

<pallas_src>
import functools

import jax
import jax.numpy as jnp
from jax import lax
from jax.experimental import pallas as pl
from jax.experimental.pallas import tpu as pltpu


# Contract x's last dim (K) with weight's last dim (K):
#   (tm, tk) . (tn, tk) -> (tm, tn)   == x @ W.T on the tile, no transpose op.
_DN = (((1,), (1,)), ((), ()))


def _mm_kernel(x_ref, w_ref, o_ref, acc_ref):
    @pl.when(pl.program_id(2) == 0)
    def _init():
        acc_ref[...] = jnp.zeros_like(acc_ref)

    acc_ref[...] += lax.dot_general(
        x_ref[...], w_ref[...], _DN, preferred_element_type=jnp.float32)

    @pl.when(pl.program_id(2) == pl.num_programs(2) - 1)
    def _finalize():
        o_ref[...] = acc_ref[...].astype(o_ref.dtype)


def _mm_bias_kernel(x_ref, w_ref, b_ref, o_ref, acc_ref):
    @pl.when(pl.program_id(2) == 0)
    def _init():
        acc_ref[...] = jnp.zeros_like(acc_ref)

    acc_ref[...] += lax.dot_general(
        x_ref[...], w_ref[...], _DN, preferred_element_type=jnp.float32)

    @pl.when(pl.program_id(2) == pl.num_programs(2) - 1)
    def _finalize():
        o_ref[...] = (acc_ref[...]
                      + b_ref[...].astype(jnp.float32)).astype(o_ref.dtype)


def _mm_single_k_kernel(x_ref, w_ref, o_ref):
    o_ref[...] = lax.dot_general(
        x_ref[...], w_ref[...], _DN, preferred_element_type=jnp.float32
    ).astype(o_ref.dtype)


def _mm_single_k_bias_kernel(x_ref, w_ref, b_ref, o_ref):
    acc = lax.dot_general(
        x_ref[...], w_ref[...], _DN, preferred_element_type=jnp.float32)
    o_ref[...] = (acc + b_ref[...].astype(jnp.float32)).astype(o_ref.dtype)


def _round_up(x, m):
    return ((x + m - 1) // m) * m


def _pick_divisor_tile(dim, max_tile, align):
    """Largest multiple of `align` <= max_tile that divides `dim`.

    `dim` must itself be a multiple of `align`, so this always terminates
    with a value >= align (no padding needed along this axis)."""
    t = min(max_tile, dim)
    t = max((t // align) * align, align)
    while dim % t != 0:
        t -= align
    return t


_VMEM_BUDGET = 40 * 1024 * 1024   # keep working set v7x-safe (64 MiB physical)


@functools.partial(jax.jit, static_argnames=("tile_m", "tile_n", "tile_k"))
def column_parallel_linear(x, weight, bias=None, *,
                           tile_m=512, tile_n=1024, tile_k=512):
    """y = x @ weight.T (+ bias).  weight: (N, K); x: (..., K)."""
    *lead, K = x.shape
    N, Kw = weight.shape
    assert K == Kw, "input feature dim mismatch"

    M = 1
    for d in lead:
        M *= d
    x2d = x.reshape(M, K)

    in_bytes = jnp.dtype(x.dtype).itemsize
    out_bytes = in_bytes

    # ---- tile selection (no padding for the common 128-aligned case) ----
    # M: equal 8-aligned tiles; a single tile when M <= tile_m (decode) so the
    # weight is streamed from HBM exactly once.
    num_m = -(-M // tile_m)
    tm = _round_up(-(-M // num_m), 8)
    Mp = tm * num_m

    # N / K: 128-aligned dims get divisor tiles (no pad); odd dims pad to 128.
    Np = _round_up(N, 128)
    Kp = _round_up(K, 128)
    tn = _pick_divisor_tile(Np, tile_n, 128)
    tk = _pick_divisor_tile(Kp, tile_k, 128)

    # Keep the (double-buffered) working set inside the VMEM budget.
    def _footprint(tm_, tn_, tk_):
        return (2 * tm_ * tk_ * in_bytes + 2 * tk_ * tn_ * in_bytes
                + 2 * tm_ * tn_ * out_bytes + tm_ * tn_ * 4)

    while _footprint(tm, tn, tk) > _VMEM_BUDGET:
        if tk >= 256 and tk % 256 == 0:
            tk //= 2
        elif tn >= 256 and tn % 256 == 0:
            tn //= 2
        elif tm >= 16 and tm % 16 == 0:
            tm //= 2
        else:
            break

    grid_m, grid_n, grid_k = Mp // tm, Np // tn, Kp // tk

    # v7x: 2 TensorCores shard the "parallel" axes -- make sure the parallel
    # grid has extent >= 2 whenever the problem can be split.
    if grid_m * grid_n < 2:
        if tn >= 256 and tn % 256 == 0:
            tn //= 2
        elif tm >= 16 and tm % 16 == 0:
            tm //= 2
        grid_m, grid_n = Mp // tm, Np // tn

    # ---- zero-pad only what is actually needed ----
    if (Mp, Kp) != (M, K):
        x2d = jnp.pad(x2d, ((0, Mp - M), (0, Kp - K)))
    w2d = weight
    if (Np, Kp) != (N, K):
        w2d = jnp.pad(weight, ((0, Np - N), (0, Kp - K)))

    # Realistic HBM traffic: W re-read per M tile, x re-read per N tile.
    x_hbm = Mp * Kp * in_bytes
    w_hbm = Np * Kp * in_bytes
    cost = pl.CostEstimate(
        flops=2 * M * N * K,
        transcendentals=0,
        bytes_accessed=grid_n * x_hbm + grid_m * w_hbm + Mp * Np * out_bytes,
    )

    if grid_k == 1:
        # Single reduction step: skip the accumulator scratch entirely.
        grid = (grid_m, grid_n)
        x_spec = pl.BlockSpec((tm, Kp), lambda i, j: (i, 0))
        w_spec = pl.BlockSpec((tn, Kp), lambda i, j: (j, 0))
        o_spec = pl.BlockSpec((tm, tn), lambda i, j: (i, j))
        b_spec = pl.BlockSpec((1, tn), lambda i, j: (0, j))
        kernel = _mm_single_k_bias_kernel if bias is not None else _mm_single_k_kernel
        scratch = []
        semantics = ("parallel", "parallel")
    else:
        grid = (grid_m, grid_n, grid_k)
        x_spec = pl.BlockSpec((tm, tk), lambda i, j, k: (i, k))
        w_spec = pl.BlockSpec((tn, tk), lambda i, j, k: (j, k))
        o_spec = pl.BlockSpec((tm, tn), lambda i, j, k: (i, j))
        b_spec = pl.BlockSpec((1, tn), lambda i, j, k: (0, j))
        kernel = _mm_bias_kernel if bias is not None else _mm_kernel
        scratch = [pltpu.VMEM((tm, tn), jnp.float32)]
        semantics = ("parallel", "parallel", "arbitrary")

    compiler_params = pltpu.CompilerParams(
        dimension_semantics=semantics,
        vmem_limit_bytes=48 * 1024 * 1024,
    )

    operands = [x2d, w2d]
    in_specs = [x_spec, w_spec]
    if bias is not None:
        b2d = bias.reshape(1, N)
        if Np != N:
            b2d = jnp.pad(b2d, ((0, 0), (0, Np - N)))
        operands.append(b2d)
        in_specs.append(b_spec)

    out = pl.pallas_call(
        kernel,
        out_shape=jax.ShapeDtypeStruct((Mp, Np), x.dtype),
        grid=grid,
        in_specs=in_specs,
        out_specs=o_spec,
        scratch_shapes=scratch,
        compiler_params=compiler_params,
        cost_estimate=cost,
    )(*operands)

    if (Mp, Np) != (M, N):
        out = out[:M, :N]
    return out.reshape(*lead, N)


if __name__ == "__main__":
    # Small shapes consistent with the module's forward (tp_size = 1):
    batch, seq = 2, 8
    input_size, output_size = 128, 256   # K, N

    key = jax.random.PRNGKey(0)
    kx, kw, kb = jax.random.split(key, 3)

    x = jax.random.normal(kx, (batch, seq, input_size), dtype=jnp.float32)
    # Deterministic parameter init (the module's __init__ only gives shapes):
    weight = jax.random.normal(
        kw, (output_size, input_size), dtype=jnp.float32) * 0.02

    # Module default: bias=False.
    y = column_parallel_linear(x, weight, None)
    y = jax.block_until_ready(y)
    y_ref = jnp.einsum("bsk,nk->bsn", x, weight)
    assert y.shape == (batch, seq, output_size)
    assert jnp.allclose(y, y_ref, atol=1e-4, rtol=1e-4)

    # Also exercise the bias=True path of the module.
    bias = jax.random.normal(kb, (output_size,), dtype=jnp.float32) * 0.01
    yb = column_parallel_linear(x, weight, bias)
    yb = jax.block_until_ready(yb)
    yb_ref = y_ref + bias
    assert jnp.allclose(yb, yb_ref, atol=1e-4, rtol=1e-4)

    # Exercise the multi-K-step accumulator path with a larger, still-small K.
    K2, N2, M2 = 1024, 384, 16
    x2 = jax.random.normal(kx, (2, 8, K2), dtype=jnp.float32)
    w2 = jax.random.normal(kw, (N2, K2), dtype=jnp.float32) * 0.02
    y2 = column_parallel_linear(x2, w2, None, tile_k=256)
    y2 = jax.block_until_ready(y2)
    y2_ref = jnp.einsum("bsk,nk->bsn", x2, w2)
    assert jnp.allclose(y2, y2_ref, atol=1e-3, rtol=1e-3)

    print("KERNEL_OK")
</pallas_src>

<mosaic_0001>
module attributes {stable_mosaic.version = 11 : i64} {
  func.func @_mm_single_k_kernel(%arg0: i32, %arg1: i32, %arg2: memref<16x128xf32, #tpu.memory_space<vmem>>, %arg3: memref<128x128xf32, #tpu.memory_space<vmem>>, %arg4: memref<16x128xf32, #tpu.memory_space<vmem>>) attributes {dimension_semantics = [#tpu.dimension_semantics<parallel>, #tpu.dimension_semantics<parallel>], iteration_bounds = array<i64: 1, 2>, scalar_prefetch = 0 : i64, scratch_operands = 0 : i64, tpu.core_type = #tpu.core_type<tc>, window_params = [{transform_indices = @transform_0, window_bounds = array<i64: 16, 128>}, {transform_indices = @transform_1, window_bounds = array<i64: 128, 128>}, {transform_indices = @transform_2, window_bounds = array<i64: 16, 128>}]} {
    %c0 = arith.constant 0 : index
    %c0_0 = arith.constant 0 : index
    %0 = vector.load %arg2[%c0, %c0_0] : memref<16x128xf32, #tpu.memory_space<vmem>>, vector<16x128xf32>
    %c0_1 = arith.constant 0 : index
    %c0_2 = arith.constant 0 : index
    %1 = vector.load %arg3[%c0_1, %c0_2] : memref<128x128xf32, #tpu.memory_space<vmem>>, vector<128x128xf32>
    %cst = arith.constant dense<0.000000e+00> : vector<16x128xf32>
    %2 = tpu.matmul %0, %1, %cst {dimension_numbers = #tpu.dot_dimension_numbers<[1], [1], [0], [0], [0, 0, 1, 0], [], []>} : vector<16x128xf32>, vector<128x128xf32>, vector<16x128xf32> -> vector<16x128xf32>
    %c0_3 = arith.constant 0 : index
    %c0_4 = arith.constant 0 : index
    %3 = vector.load %arg4[%c0_3, %c0_4] : memref<16x128xf32, #tpu.memory_space<vmem>>, vector<16x128xf32>
    tpu.vector_store %arg4[%c0_3, %c0_4], %2 {strides = array<i32>} : memref<16x128xf32, #tpu.memory_space<vmem>>, vector<16x128xf32>,
    return
  }
  func.func @transform_0(%arg0: i32, %arg1: i32) -> (i32, i32) {
    %c0_i32 = arith.constant 0 : i32
    %c0_i32_0 = arith.constant 0 : i32
    return %arg0, %c0_i32 : i32, i32
  }
  func.func @transform_1(%arg0: i32, %arg1: i32) -> (i32, i32) {
    %c0_i32 = arith.constant 0 : i32
    %c0_i32_0 = arith.constant 0 : i32
    return %arg1, %c0_i32 : i32, i32
  }
  func.func @transform_2(%arg0: i32, %arg1: i32) -> (i32, i32) {
    %c0_i32 = arith.constant 0 : i32
    return %arg0, %arg1 : i32, i32
  }
}

</mosaic_0001>

<llo_original>
// kernel: column_parallel_linear.1
$region0: #{column_parallel_linear.1}
  #allocation0 [shape = 'u32[]', space=smem, size = 0x4, offset = 0x4, fixed_abs, tag = 'smem constant byte address 0x4 - core index']
  #allocation1 [shape = 'u32[144,128]{1,0:T(1,128)}', space=vmem, size = 0x12000, scoped, tag = 'internal scratch']
  %s0 = inlined_call_operand.hbm [shape: f32[16,128], index: 0, kind: input, shape index: {}]
  %s1 = inlined_call_operand.hbm [shape: f32[256,128], index: 1, kind: input, shape index: {}]
  %s2 = inlined_call_operand.hbm [shape: f32[16,256], index: 2, kind: output, shape index: {}]
  %s3 = sld [smem:[#allocation0]]
  $region49: #{column_parallel_linear.1} parent=0
    _
  %s5 = ssub.s32 1, %s3
  %s6 = scalar_select 0, %s5, %s3
  $region1: #{column_parallel_linear.1} parent=0
    #allocation2 [shape = 'u8[8192]{0}', space=vmem, size = 0x2000, scoped, tag = 'input window, operand 0, single buffered']
    #allocation3 [shape = 's32[2]{0}', space=sflag, size = 0x8, scoped, tag = 'scoped memory for column_parallel_linear.1']
    #allocation4 [shape = 's32[2]{0}', space=sflag, size = 0x8, scoped, tag = 'scoped memory for column_parallel_linear.1']
    #allocation5 [shape = 'u8[131072]{0}', space=vmem, size = 0x20000, scoped, tag = 'input window, operand 1']
    #allocation6 [shape = 's32[2]{0}', space=sflag, size = 0x8, scoped, tag = 'scoped memory for column_parallel_linear.1']
    #allocation7 [shape = 'u8[16384]{0}', space=vmem, size = 0x4000, scoped, tag = 'output window, operand 0']
    %7 = vsyncpa [#allocation3], 0
    %8 = vsyncpa [#allocation6], 0
    %s9 = scalar_lea.sflag [#allocation6], 1
    %10 = vsyncpa %s9, 0
    %11 = vsyncpa [#allocation4], 0
    %s12 = scalar_lea.sflag [#allocation4], 1
    %13 = vsyncpa %s12, 0
    loop: start=0, step=1, limit=4
    $region2: #{column_parallel_linear.1} parent=1 // loop_pre_header
      _
    $region3: #{column_parallel_linear.1} parent=1 // loop_header
      %s15 = sphi 0, %s19
      %p16 = scmp.ge.s32.totalorder %s15, 4
      %s22 = sphi 0, %s34
      %s23 = sphi 0, %s30
      %s24 = sphi 0, %s22
      %s25 = sphi 0, %s23
      %s26 = sphi 0, %s24
      %s27 = sphi 0, %s25
      %s37 = sphi 0, %s39
      %s40 = sphi 0, %s37
      %s41 = sphi 0, %s40
      %s57 = sphi 0, %s41
      %s63 = sphi 0, %s65
      %s66 = sphi 0, %s63
      %s67 = sphi 0, %s66
      %s83 = sphi 0, %s67
      %s91 = sphi 0, %s93
      %s94 = sphi 0, %s91
      %s95 = sphi 0, %s94
      %s111 = sphi 0, %s95
    $region4: #{column_parallel_linear.1} parent=1 // loop_header_branch
      %18 = sbr.rel (%p16) target = $region8
    $region5: #{column_parallel_linear.1} parent=1 // loop_body
      %s20 = ssub.s32 %s15, 1
      %s21 = ssub.s32 %s15, 2
      %s28 = sadd.s32 1, %s23
      %p29 = scmp.ge.s32.totalorder %s28, 2
      %s30 = scalar_select %p29, 0, %s28
      %s31 = sadd.s32 1, %s22
      %s32 = scalar_select %p29, %s31, %s22
      %p33 = scmp.ge.s32.totalorder %s32, 1
      %s34 = scalar_select %p33, 0, %s32
      %s35 = ssub.s32 %s22, %s34
      %p36 = scmp.eq.s32.totalorder %s35, 0
      %s38 = sadd.s32 %s37, 1
      %s39 = scalar_select %p36, %s37, %s38
      %p42 = pneg %p36
      %p43 = scmp.eq.s32.totalorder %s15, 1
      %p44 = por %p42, %p43
      %p45 = scmp.ne.s32.totalorder %s37, %s40
      %p46 = scmp.eq.s32.totalorder %s15, 0
      %p47 = por %p45, %p46
      %p48 = scmp.ne.s32.totalorder %s37, %s40
      %p49 = scmp.eq.s32.totalorder %s20, 1
      %p50 = por %p48, %p49
      %p51 = scmp.ne.s32.totalorder %s40, %s41
      %p52 = scmp.eq.s32.totalorder %s20, 0
      %p53 = por %p51, %p52
      %p54 = scmp.ne.s32.totalorder %s40, %s41
      %p55 = scmp.eq.s32.totalorder %s21, 1
      %p56 = por %p54, %p55
      %p58 = scmp.ne.s32.totalorder %s41, %s57
      %p59 = scmp.eq.s32.totalorder %s21, 0
      %p60 = por %p58, %p59
      %s61 = ssub.s32 %s23, %s30
      %p62 = scmp.eq.s32.totalorder %s61, 0
      %s64 = sadd.s32 %s63, 1
      %s65 = scalar_select %p62, %s63, %s64
      %p68 = pneg %p62
      %p69 = scmp.eq.s32.totalorder %s15, 1
      %p70 = por %p68, %p69
      %p71 = scmp.ne.s32.totalorder %s63, %s66
      %p72 = scmp.eq.s32.totalorder %s15, 0
      %p73 = por %p71, %p72
      %p74 = scmp.ne.s32.totalorder %s63, %s66
      %p75 = scmp.eq.s32.totalorder %s20, 1
      %p76 = por %p74, %p75
      %p77 = scmp.ne.s32.totalorder %s66, %s67
      %p78 = scmp.eq.s32.totalorder %s20, 0
      %p79 = por %p77, %p78
      %p80 = scmp.ne.s32.totalorder %s66, %s67
      %p81 = scmp.eq.s32.totalorder %s21, 1
      %p82 = por %p80, %p81
      %p84 = scmp.ne.s32.totalorder %s67, %s83
      %p85 = scmp.eq.s32.totalorder %s21, 0
      %p86 = por %p84, %p85
      %s87 = ssub.s32 %s22, %s34
      %s88 = ssub.s32 %s23, %s30
      %s89 = sor.u32 %s87, %s88
      %p90 = scmp.eq.s32.totalorder %s89, 0
      %s92 = sadd.s32 %s91, 1
      %s93 = scalar_select %p90, %s91, %s92
      %p96 = pneg %p90
      %p97 = scmp.eq.s32.totalorder %s15, 1
      %p98 = por %p96, %p97
      %p99 = scmp.ne.s32.totalorder %s91, %s94
      %p100 = scmp.eq.s32.totalorder %s15, 0
      %p101 = por %p99, %p100
      %p102 = scmp.ne.s32.totalorder %s91, %s94
      %p103 = scmp.eq.s32.totalorder %s20, 1
      %p104 = por %p102, %p103
      %p105 = scmp.ne.s32.totalorder %s94, %s95
      %p106 = scmp.eq.s32.totalorder %s20, 0
      %p107 = por %p105, %p106
      %p108 = scmp.ne.s32.totalorder %s94, %s95
      %p109 = scmp.eq.s32.totalorder %s21, 1
      %p110 = por %p108, %p109
      %p112 = scmp.ne.s32.totalorder %s95, %s111
      %p113 = scmp.eq.s32.totalorder %s21, 0
      %p114 = por %p112, %p113
      %p115 = scmp.le.s32.totalorder 1, %s15
      %p116 = scmp.lt.s32.totalorder %s15, 3
      %p117 = pnand %p115, %p116
      %p118 = pneg %p117
      // Predicated region
      $region9: #{column_parallel_linear.1} parent=5 // pred_check
        _
      $region10: #{column_parallel_linear.1} parent=5 // pred_check_branch
        %120 = sbr.rel (%p117) target = $region12
      $region11: #{column_parallel_linear.1} parent=5 // pred_region
        %s121 = ssub.s32 %s15, 1
        // Predicated region
        $region13: #{column_parallel_linear.1} parent=11 // pred_check
          %p122 = pneg %p53
        $region14: #{column_parallel_linear.1} parent=11 // pred_check_branch
          %124 = sbr.rel (%p122) target = $region16
        $region15: #{column_parallel_linear.1} parent=11 // pred_region
          %s125 = smul.u32 2, %s24
          %s127 = ssub.s32 256, 256
          %128 = vsyncadd [#allocation3], %s127
          %s129 = smul.addr %s125, 128
          %s130 = scalar_lea.hbm %s0, %s129
          %s131 = sshll.u32 [#allocation2], 4
          %s132 = int_to_ptr.vmem [resolvable:$true] %s131
          %137 = dma.hbm_to_vmem [thread:$0]  %s130, 256, %s132, [#allocation3], 128, 128, 8
        $region16: #{column_parallel_linear.1} parent=11 // pred_fallthru
          _
      $region12: #{column_parallel_linear.1} parent=5 // pred_fallthru
        _
      %p138 = scmp.lt.s32.totalorder %s15, 2
      // Predicated region
      $region17: #{column_parallel_linear.1} parent=5 // pred_check
        %p139 = pneg %p138
      $region18: #{column_parallel_linear.1} parent=5 // pred_check_branch
        %141 = sbr.rel (%p139) target = $region20
      $region19: #{column_parallel_linear.1} parent=5 // pred_region
        // Predicated region
        $region21: #{column_parallel_linear.1} parent=19 // pred_check
          %p142 = pneg %p73
        $region22: #{column_parallel_linear.1} parent=19 // pred_check_branch
          %144 = sbr.rel (%p142) target = $region24
        $region23: #{column_parallel_linear.1} parent=19 // pred_region
          %s145 = sand.u32 %s63, 1
          %s146 = scalar_lea.sflag [#allocation6], %s145
          %s147 = sand.u32 %s63, 1
          %s148 = smul.addr %s147, 128
          %s149 = scalar_lea.vmem [#allocation5], %s148
          %s150 = smul.u32 16, %s23
          %s152 = ssub.s32 2048, 2048
          %153 = vsyncadd %s146, %s152
          %s154 = smul.addr %s150, 128
          %s155 = scalar_lea.hbm %s1, %s154
          %s156 = sshll.u32 %s149, 4
          %s157 = int_to_ptr.vmem [resolvable:$true] %s156
          %162 = dma.hbm_to_vmem [thread:$0]  %s155, 2048, %s157, %s146, 128, 128, 8
        $region24: #{column_parallel_linear.1} parent=19 // pred_fallthru
          _
      $region20: #{column_parallel_linear.1} parent=5 // pred_fallthru
        _
      %p163 = scmp.le.s32.totalorder 1, %s15
      %p164 = scmp.lt.s32.totalorder %s15, 3
      %p165 = pnand %p163, %p164
      %p166 = pneg %p165
      // Predicated region
      $region25: #{column_parallel_linear.1} parent=5 // pred_check
        _
      $region26: #{column_parallel_linear.1} parent=5 // pred_check_branch
        %168 = sbr.rel (%p165) target = $region28
      $region27: #{column_parallel_linear.1} parent=5 // pred_region
        %s169 = ssub.s32 %s15, 1
        // Predicated region
        $region29: #{column_parallel_linear.1} parent=27 // pred_check
          %p170 = pneg %p53
        $region30: #{column_parallel_linear.1} parent=27 // pred_check_branch
          %172 = sbr.rel (%p170) target = $region32
        $region31: #{column_parallel_linear.1} parent=27 // pred_region
          %173 = dma.done [#allocation3], 256
        $region32: #{column_parallel_linear.1} parent=27 // pred_fallthru
          _
        %s174 = sand.u32 %s66, 1
        %s175 = scalar_lea.sflag [#allocation6], %s174
        %s176 = sand.u32 %s66, 1
        %s177 = smul.addr %s176, 128
        %s178 = scalar_lea.vmem [#allocation5], %s177
        // Predicated region
        $region33: #{column_parallel_linear.1} parent=27 // pred_check
          %p179 = pneg %p79
        $region34: #{column_parallel_linear.1} parent=27 // pred_check_branch
          %181 = sbr.rel (%p179) target = $region36
        $region35: #{column_parallel_linear.1} parent=27 // pred_region
          %182 = dma.done %s175, 2048
        $region36: #{column_parallel_linear.1} parent=27 // pred_fallthru
          _
        %p183 = pneg %p53
        %p184 = pneg %p50
        %s185 = sand.u32 %s66, 1
        %s186 = scalar_lea.sflag [#allocation6], %s185
        %s187 = sand.u32 %s66, 1
        %s188 = smul.addr %s187, 128
        %s189 = scalar_lea.vmem [#allocation5], %s188
        %p190 = pneg %p79
        %p191 = pneg %p76
        %p192 = pneg %p107
        %p193 = pneg %p104
        %s194 = sand.u32 %s94, 1
        %s195 = scalar_lea.sflag [#allocation4], %s194
        %s196 = sand.u32 %s94, 1
        %s197 = smul.addr %s196, 16
        %s198 = scalar_lea.vmem [#allocation7], %s197
        %s199 = smul.u32 2, %s24
        %s200 = smul.u32 16, %s25
        %s201 = smul.u32 2, %s24
        %v202 = vld [vmem:[#allocation2] sm:$0xff]
        %v203 = vld [vmem:[#allocation2 + $0x8] sm:$0xff]
        %v204 = vld [vmem:[%s178] sm:$0xff]
        %v205 = vld [vmem:[%s178 + $0x8] sm:$0xff]
        %v206 = vld [vmem:[%s178 + $0x10] sm:$0xff]
        %v207 = vld [vmem:[%s178 + $0x18] sm:$0xff]
        %v208 = vld [vmem:[%s178 + $0x20] sm:$0xff]
        %v209 = vld [vmem:[%s178 + $0x28] sm:$0xff]
        %v210 = vld [vmem:[%s178 + $0x30] sm:$0xff]
        %v211 = vld [vmem:[%s178 + $0x38] sm:$0xff]
        %v212 = vld [vmem:[%s178 + $0x40] sm:$0xff]
        %v213 = vld [vmem:[%s178 + $0x48] sm:$0xff]
        %v214 = vld [vmem:[%s178 + $0x50] sm:$0xff]
        %v215 = vld [vmem:[%s178 + $0x58] sm:$0xff]
        %v216 = vld [vmem:[%s178 + $0x60] sm:$0xff]
        %v217 = vld [vmem:[%s178 + $0x68] sm:$0xff]
        %v218 = vld [vmem:[%s178 + $0x70] sm:$0xff]
        %v219 = vld [vmem:[%s178 + $0x78] sm:$0xff]
        %220 = vmatprep.subr.mxu0 0.0
        %221 = vmatpush1.xpose.msra.mxu0 %v219
        %222 = vmatprep.subr.mxu0 0.0
        %223 = vmatpush1.xpose.msra.mxu0 %v218
        %224 = vmatprep.subr.mxu0 0.0
        %225 = vmatpush1.xpose.msra.mxu0 %v217
        %226 = vmatprep.subr.mxu0 0.0
        %227 = vmatpush1.xpose.msra.mxu0 %v216
        %228 = vmatprep.subr.mxu0 0.0
        %229 = vmatpush1.xpose.msra.mxu0 %v215
        %230 = vmatprep.subr.mxu0 0.0
        %231 = vmatpush1.xpose.msra.mxu0 %v214
        %232 = vmatprep.subr.mxu0 0.0
        %233 = vmatpush1.xpose.msra.mxu0 %v213
        %234 = vmatprep.subr.mxu0 0.0
        %235 = vmatpush1.xpose.msra.mxu0 %v212
        %236 = vmatprep.subr.mxu0 0.0
        %237 = vmatpush1.xpose.msra.mxu0 %v211
        %238 = vmatprep.subr.mxu0 0.0
        %239 = vmatpush1.xpose.msra.mxu0 %v210
        %240 = vmatprep.subr.mxu0 0.0
        %241 = vmatpush1.xpose.msra.mxu0 %v209
        %242 = vmatprep.subr.mxu0 0.0
        %243 = vmatpush1.xpose.msra.mxu0 %v208
        %244 = vmatprep.subr.mxu0 0.0
        %245 = vmatpush1.xpose.msra.mxu0 %v207
        %246 = vmatprep.subr.mxu0 0.0
        %247 = vmatpush1.xpose.msra.mxu0 %v206
        %248 = vmatprep.subr.mxu0 0.0
        %249 = vmatpush1.xpose.msra.mxu0 %v205
        %250 = vmatprep.subr.mxu0 0.0
        %251 = vmatpush1.xpose.msra.mxu0 %v204
        %252 = vmatprep.subr.mxu0 0.0
        %253 = vmatpush2.xpose.msra.mxu0 0.0
        %254 = vmatprep.subr.mxu0 0.0
        %255 = vmatpush2.xpose.msra.mxu0 0.0
        %256 = vmatprep.subr.mxu0 0.0
        %257 = vmatpush2.xpose.msra.mxu0 0.0
        %258 = vmatprep.subr.mxu0 0.0
        %259 = vmatpush2.xpose.msra.mxu0 0.0
        %260 = vmatprep.subr.mxu0 0.0
        %261 = vmatpush2.xpose.msra.mxu0 0.0
        %262 = vmatprep.subr.mxu0 0.0
        %263 = vmatpush2.xpose.msra.mxu0 0.0
        %264 = vmatprep.subr.mxu0 0.0
        %265 = vmatpush2.xpose.msra.mxu0 0.0
        %266 = vmatprep.subr.mxu0 0.0
        %267 = vmatpush2.xpose.msra.mxu0 0.0
        %268 = vmatprep.subr.mxu0 0.0
        %269 = vmatpush2.xpose.msra.mxu0 0.0
        %270 = vmatprep.subr.mxu0 0.0
        %271 = vmatpush2.xpose.msra.mxu0 0.0
        %272 = vmatprep.subr.mxu0 0.0
        %273 = vmatpush2.xpose.msra.mxu0 0.0
        %274 = vmatprep.subr.mxu0 0.0
        %275 = vmatpush2.xpose.msra.mxu0 0.0
        %276 = vmatprep.subr.mxu0 0.0
        %277 = vmatpush2.xpose.msra.mxu0 0.0
        %278 = vmatprep.subr.mxu0 0.0
        %279 = vmatpush2.xpose.msra.mxu0 0.0
        %280 = vmatprep.subr.mxu0 0.0
        %281 = vmatpush2.xpose.msra.mxu0 0.0
        %282 = vmatprep.subr.mxu0 0.0
        %283 = vmatpush2.xpose.msra.mxu0 0.0
        %284 = vmatprep.mubr.f32.mxu0 0.0
        %285 = vmatmul.mubr.f32.gmra.mxu0 %v202
        %v286 = vpop.f32.mrf.mxu0
        %v287 = vadd.f32 0.0, %v286
        %v288 = vpop.f32.mrf.mxu0
        %289 = vmatprep.mubr.f32.mxu0 0.0
        %290 = vmatmul.mubr.f32.gmra.mxu0 %v203
        %v291 = vpop.f32.mrf.mxu0
        %v292 = vadd.f32 0.0, %v291
        %v293 = vpop.f32.mrf.mxu0
        %294 = vdwg.mxu0
        %295 = vst [vmem:[%s198] sm:$0xff] %v287
        %296 = vst [vmem:[%s198 + $0x8] sm:$0xff] %v292
        %s297 = sand.u32 %s94, 1
        %s298 = scalar_lea.sflag [#allocation4], %s297
        %s299 = sand.u32 %s94, 1
        %s300 = smul.addr %s299, 16
        %s301 = scalar_lea.vmem [#allocation7], %s300
        // Predicated region
        $region37: #{column_parallel_linear.1} parent=27 // pred_check
          %p302 = pneg %p104
        $region38: #{column_parallel_linear.1} parent=27 // pred_check_branch
          %304 = sbr.rel (%p302) target = $region40
        $region39: #{column_parallel_linear.1} parent=27 // pred_region
          %s305 = smul.u32 2, %s24
          %s307 = ssub.s32 256, 256
          %308 = vsyncadd %s298, %s307
          %s309 = smul.addr %s305, 2
          %s310 = sadd.s32 %s25, %s309
          %s311 = smul.addr %s310, 128
          %s312 = scalar_lea.hbm %s2, %s311
          %s313 = sshll.u32 %s301, 4
          %s314 = int_to_ptr.vmem [resolvable:$true] %s313
          %319 = dma.vmem_to_hbm [thread:$0]  %s314, 256, %s312, %s298, 128, 256, 8
        $region40: #{column_parallel_linear.1} parent=27 // pred_fallthru
          _
      $region28: #{column_parallel_linear.1} parent=5 // pred_fallthru
        _
      %p320 = scmp.le.s32.totalorder 2, %s15
      // Predicated region
      $region41: #{column_parallel_linear.1} parent=5 // pred_check
        %p321 = pneg %p320
      $region42: #{column_parallel_linear.1} parent=5 // pred_check_branch
        %323 = sbr.rel (%p321) target = $region44
      $region43: #{column_parallel_linear.1} parent=5 // pred_region
        %s324 = ssub.s32 %s15, 2
        // Predicated region
        $region45: #{column_parallel_linear.1} parent=43 // pred_check
          %p325 = pneg %p110
        $region46: #{column_parallel_linear.1} parent=43 // pred_check_branch
          %327 = sbr.rel (%p325) target = $region48
        $region47: #{column_parallel_linear.1} parent=43 // pred_region
          %s328 = sand.u32 %s95, 1
          %s329 = scalar_lea.sflag [#allocation4], %s328
          %s330 = sand.u32 %s95, 1
          %s331 = smul.addr %s330, 16
          %s332 = scalar_lea.vmem [#allocation7], %s331
          %333 = dma.done %s329, 256
        $region48: #{column_parallel_linear.1} parent=43 // pred_fallthru
          _
      $region44: #{column_parallel_linear.1} parent=5 // pred_fallthru
        _
    $region6: #{column_parallel_linear.1} parent=1 // loop_footer
      %s19 = sadd.s32 1, %s15
    $region7: #{column_parallel_linear.1} parent=1 // loop_footer_branch
      %14 = sbr.rel target = $region3
    $region8: #{column_parallel_linear.1} parent=1 // loop_exit
      _
    %334 = vsyncpa [#allocation3], 1
    %s335 = scalar_lea.sflag [#allocation3], 1
    %336 = vsyncpa %s335, 1
    %337 = vsyncpa [#allocation6], 1
    %s338 = scalar_lea.sflag [#allocation6], 1
    %339 = vsyncpa %s338, 1
    %340 = vsyncpa [#allocation4], 1
    %s341 = scalar_lea.sflag [#allocation4], 1
    %342 = vsyncpa %s341, 1

</llo_original>
